<compile_context>
chip_gen: v6e
topology: v6e:2x2x1
jax: 0.10.0
libtpu: 0.0.40
codegen_flags: <defaults>
</compile_context>

<pallas_src>
import jax
import jax.numpy as jnp
from jax.experimental import pallas as pl
from jax.experimental.pallas import tpu as pltpu


def _round_up(x, m):
    return ((x + m - 1) // m) * m


def adv_net_kernel(x_ref, w1_ref, b1_ref, w2_ref, b2_ref, w3_ref, b3_ref,
                   out_ref):
    """Fused 3-layer MLP forward for one batch tile (eval mode).

    x_ref  : [TB, F]   any float dtype (cast to the weight dtype for the MXU)
    w1_ref : [F, 32]   w2_ref : [32, 32]   (x @ W layout)
    w3_ref : [8, 32]   PyTorch [out, in] layout, zero-padded 1 -> 8 rows
    b*_ref : [1, 32] / [1, 32] / [1, 1]    (f32)
    out_ref: [1, 1, TB]  lane-dense sigmoid output (batch on the lane axis)
    """
    cdt = w1_ref.dtype  # bf16 -> native MXU path; accumulation stays f32.

    # Layer 1 + LeakyReLU(0.01).  Dropout is identity in eval mode.
    h = jnp.dot(x_ref[...].astype(cdt), w1_ref[...],
                preferred_element_type=jnp.float32) + b1_ref[...]
    h = jnp.where(h > 0, h, 0.01 * h).astype(cdt)

    # Layer 2 + LeakyReLU(0.01).
    h = jnp.dot(h, w2_ref[...],
                preferred_element_type=jnp.float32) + b2_ref[...]
    h = jnp.where(h > 0, h, 0.01 * h).astype(cdt)

    # Layer 3, computed lane-dense: w3 [8,32] (rows 1..7 zero) contracted with
    # h [TB,32] on the 32-dim (transposed-RHS matmul) -> [8, TB].  Row 0 is the
    # real output; batch lands on lanes, so the store and HBM writeback are
    # narrow and dense instead of 128x write-amplified.
    z = jax.lax.dot_general(
        w3_ref[...], h,
        dimension_numbers=(((1,), (1,)), ((), ())),
        preferred_element_type=jnp.float32)
    z0 = z[0:1, :] + b3_ref[...]
    out_ref[...] = (1.0 / (1.0 + jnp.exp(-z0))).reshape(out_ref.shape)


def _vmem_estimate_bytes(tb, f, x_itemsize, w_itemsize):
    # Double-buffered x tile + double-buffered out tile (f32).
    est = 2 * tb * f * x_itemsize + 2 * tb * 4
    # Weights/biases (lane dim pads to 128 in VMEM), double-buffered.
    w_elems = f * 128 + 32 * 128 + 16 * 128          # w1, w2, w3 (lane-padded)
    b_elems = 3 * 8 * 128                            # biases pad to (8,128)
    est += 2 * (w_elems * w_itemsize + b_elems * 4)
    return est


def adversarial_network_forward(x, params, *, block_b=1024,
                                vmem_budget_bytes=40 * 1024 * 1024):
    """Eval-mode forward.  x: [B, in_feature] float.  Returns [B, 1] f32."""
    w1, b1, w2, b2, w3, b3 = params
    B, F = x.shape
    assert w1.shape[0] == F, "in_feature mismatch between x and params"

    # ---- batch tile selection ----------------------------------------------
    TB = min(block_b, _round_up(B, 8))
    # Keep >= 2 grid steps when the batch is worth splitting so
    # dimension_semantics=("parallel",) can engage v7x's second TensorCore.
    if B > 512 and pl.cdiv(B, TB) < 2:
        TB = max(8, _round_up(pl.cdiv(B, 2), 8))
    # Shrink against a VMEM budget that also fits v7x's 64 MiB / TensorCore.
    while TB > 8 and _vmem_estimate_bytes(
            TB, F, x.dtype.itemsize, w1.dtype.itemsize) > vmem_budget_bytes:
        TB = max(8, _round_up(TB // 2, 8))

    G = pl.cdiv(B, TB)

    est = _vmem_estimate_bytes(TB, F, x.dtype.itemsize, w1.dtype.itemsize)
    vmem_limit = None
    if est > 12 * 1024 * 1024:   # only override the scoped default when needed
        vmem_limit = min(_round_up(est + est // 2, 1 << 20), 48 * 1024 * 1024)

    grid_spec = pltpu.PrefetchScalarGridSpec(
        num_scalar_prefetch=0,
        grid=(G,),
        in_specs=[
            # x: last block dim == full F (legal for any F), no host-side pad;
            # the ragged last batch block (if any) is masked by Pallas.
            pl.BlockSpec((TB, F), lambda i: (i, 0)),
            # Grid-invariant weights/biases: constant index_map -> fetched once
            # and kept resident.  (On a VMEM-tight v7x config these could also
            # take pipeline_mode=pl.Buffered(1); footprint is negligible here.)
            pl.BlockSpec(w1.shape, lambda i: (0, 0)),
            pl.BlockSpec(b1.shape, lambda i: (0, 0)),
            pl.BlockSpec(w2.shape, lambda i: (0, 0)),
            pl.BlockSpec(b2.shape, lambda i: (0, 0)),
            pl.BlockSpec(w3.shape, lambda i: (0, 0)),
            pl.BlockSpec(b3.shape, lambda i: (0, 0)),
        ],
        out_specs=pl.BlockSpec((1, 1, TB), lambda i: (i, 0, 0)),
    )

    out_tiled = pl.pallas_call(
        adv_net_kernel,
        out_shape=jax.ShapeDtypeStruct((G, 1, TB), jnp.float32),
        grid_spec=grid_spec,
        compiler_params=pltpu.CompilerParams(
            dimension_semantics=("parallel",),   # independent batch tiles
            vmem_limit_bytes=vmem_limit,
        ),
    )(x, w1, b1, w2, b2, w3, b3)

    # [G, 1, TB] (batch on lanes) -> [B, 1]; trailing garbage (ragged last
    # tile) is sliced off.  Pure slice/reshape of B useful floats.
    return out_tiled.reshape(G * TB)[:B].reshape(B, 1)


def init_params(key, in_feature, dtype=jnp.bfloat16):
    """PyTorch-matching init: normal(0,0.01)/(0,0.01)/(0,0.3) weights, zero bias.

    Staged once for the kernel: w1/w2 stored [in, out] (kernel does x @ W),
    w3 stored in PyTorch [out, in] = [1, 32] orientation zero-padded to 8 rows
    (sublane-aligned M dim for the transposed-RHS matmul).  Weights in bf16,
    biases in f32.
    """
    k1, k2, k3 = jax.random.split(key, 3)
    w1 = (0.01 * jax.random.normal(k1, (in_feature, 32), jnp.float32)).astype(dtype)
    b1 = jnp.zeros((1, 32), jnp.float32)
    w2 = (0.01 * jax.random.normal(k2, (32, 32), jnp.float32)).astype(dtype)
    b2 = jnp.zeros((1, 32), jnp.float32)
    w3 = jnp.zeros((8, 32), jnp.float32).at[0, :].set(
        0.3 * jax.random.normal(k3, (32,), jnp.float32)).astype(dtype)
    b3 = jnp.zeros((1, 1), jnp.float32)
    return (w1, b1, w2, b2, w3, b3)


def reference_forward(x, params):
    """Plain-JAX f32 eval-mode reference."""
    w1, b1, w2, b2, w3, b3 = params
    w1, w2, w3 = (w.astype(jnp.float32) for w in (w1, w2, w3))
    lrelu = lambda h: jnp.where(h > 0, h, 0.01 * h)
    h = lrelu(x @ w1 + b1)
    h = lrelu(h @ w2 + b2)
    z = h @ w3[0:1, :].T + b3
    return 1.0 / (1.0 + jnp.exp(-z))


if __name__ == "__main__":
    B = 8             # batch
    IN_FEATURE = 64   # in_feature is a constructor arg; small test value

    key = jax.random.PRNGKey(0)
    kx, kp = jax.random.split(key)
    x = jax.random.normal(kx, (B, IN_FEATURE), jnp.float32)
    params = init_params(kp, IN_FEATURE)   # bf16 weights, f32 biases

    out = adversarial_network_forward(x, params)
    jax.block_until_ready(out)

    out_ref = reference_forward(x, params)
    assert out.shape == (B, 1), f"bad output shape {out.shape}"
    # bf16 MXU operands (f32 accumulation) vs the pure-f32 reference.
    assert jnp.allclose(out, out_ref, atol=2e-2, rtol=2e-2), "output mismatch"

    # TODO(synk): training-mode Dropout(0.5) (stochastic masking via
    # pltpu.prng_seed / pltpu.prng_random_bits) not implemented; eval-mode only.

    print("KERNEL_OK")
</pallas_src>

<mosaic_0001>
module attributes {stable_mosaic.version = 11 : i64} {
  func.func @adv_net_kernel(%arg0: i32, %arg1: memref<8x64xf32, #tpu.memory_space<vmem>>, %arg2: memref<64x32xbf16, #tpu.memory_space<vmem>>, %arg3: memref<1x32xf32, #tpu.memory_space<vmem>>, %arg4: memref<32x32xbf16, #tpu.memory_space<vmem>>, %arg5: memref<1x32xf32, #tpu.memory_space<vmem>>, %arg6: memref<8x32xbf16, #tpu.memory_space<vmem>>, %arg7: memref<1x1xf32, #tpu.memory_space<vmem>>, %arg8: memref<1x1x8xf32, #tpu.memory_space<vmem>>) attributes {dimension_semantics = [#tpu.dimension_semantics<parallel>], iteration_bounds = array<i64: 1>, scalar_prefetch = 0 : i64, scratch_operands = 0 : i64, tpu.core_type = #tpu.core_type<tc>, window_params = [{transform_indices = @transform_0, window_bounds = array<i64: 8, 64>}, {pipeline_mode = #tpu.pipeline_mode<synchronous>, transform_indices = @transform_1, window_bounds = array<i64: 64, 32>}, {pipeline_mode = #tpu.pipeline_mode<synchronous>, transform_indices = @transform_2, window_bounds = array<i64: 1, 32>}, {pipeline_mode = #tpu.pipeline_mode<synchronous>, transform_indices = @transform_3, window_bounds = array<i64: 32, 32>}, {pipeline_mode = #tpu.pipeline_mode<synchronous>, transform_indices = @transform_4, window_bounds = array<i64: 1, 32>}, {pipeline_mode = #tpu.pipeline_mode<synchronous>, transform_indices = @transform_5, window_bounds = array<i64: 8, 32>}, {pipeline_mode = #tpu.pipeline_mode<synchronous>, transform_indices = @transform_6, window_bounds = array<i64: 1, 1>}, {transform_indices = @transform_7, window_bounds = array<i64: 1, 1, 8>}]} {
    %c0 = arith.constant 0 : index
    %c0_0 = arith.constant 0 : index
    %0 = vector.load %arg1[%c0, %c0_0] : memref<8x64xf32, #tpu.memory_space<vmem>>, vector<8x64xf32>
    %1 = arith.truncf %0 : vector<8x64xf32> to vector<8x64xbf16>
    %c0_1 = arith.constant 0 : index
    %c0_2 = arith.constant 0 : index
    %2 = vector.load %arg2[%c0_1, %c0_2] : memref<64x32xbf16, #tpu.memory_space<vmem>>, vector<64x32xbf16>
    %cst = arith.constant dense<0.000000e+00> : vector<8x32xf32>
    %3 = tpu.matmul %1, %2, %cst {dimension_numbers = #tpu.dot_dimension_numbers<[1], [0], [0], [1], [0, 0, 1, 1], [], []>} : vector<8x64xbf16>, vector<64x32xbf16>, vector<8x32xf32> -> vector<8x32xf32>
    %c0_3 = arith.constant 0 : index
    %c0_4 = arith.constant 0 : index
    %4 = vector.load %arg3[%c0_3, %c0_4] : memref<1x32xf32, #tpu.memory_space<vmem>>, vector<1x32xf32>
    %5 = vector.broadcast %4 : vector<1x32xf32> to vector<8x32xf32>
    %6 = arith.addf %3, %5 : vector<8x32xf32>
    %cst_5 = arith.constant 0.000000e+00 : f32
    %7 = vector.broadcast %cst_5 : f32 to vector<8x32xf32>
    %8 = arith.cmpf ogt, %6, %7 : vector<8x32xf32>
    %cst_6 = arith.constant 0.00999999977 : f32
    %9 = vector.broadcast %cst_6 : f32 to vector<8x32xf32>
    %10 = arith.mulf %9, %6 : vector<8x32xf32>
    %11 = arith.select %8, %6, %10 : vector<8x32xi1>, vector<8x32xf32>
    %12 = arith.truncf %11 : vector<8x32xf32> to vector<8x32xbf16>
    %c0_7 = arith.constant 0 : index
    %c0_8 = arith.constant 0 : index
    %13 = vector.load %arg4[%c0_7, %c0_8] : memref<32x32xbf16, #tpu.memory_space<vmem>>, vector<32x32xbf16>
    %cst_9 = arith.constant dense<0.000000e+00> : vector<8x32xf32>
    %14 = tpu.matmul %12, %13, %cst_9 {dimension_numbers = #tpu.dot_dimension_numbers<[1], [0], [0], [1], [0, 0, 1, 1], [], []>} : vector<8x32xbf16>, vector<32x32xbf16>, vector<8x32xf32> -> vector<8x32xf32>
    %c0_10 = arith.constant 0 : index
    %c0_11 = arith.constant 0 : index
    %15 = vector.load %arg5[%c0_10, %c0_11] : memref<1x32xf32, #tpu.memory_space<vmem>>, vector<1x32xf32>
    %16 = vector.broadcast %15 : vector<1x32xf32> to vector<8x32xf32>
    %17 = arith.addf %14, %16 : vector<8x32xf32>
    %cst_12 = arith.constant 0.000000e+00 : f32
    %18 = vector.broadcast %cst_12 : f32 to vector<8x32xf32>
    %19 = arith.cmpf ogt, %17, %18 : vector<8x32xf32>
    %cst_13 = arith.constant 0.00999999977 : f32
    %20 = vector.broadcast %cst_13 : f32 to vector<8x32xf32>
    %21 = arith.mulf %20, %17 : vector<8x32xf32>
    %22 = arith.select %19, %17, %21 : vector<8x32xi1>, vector<8x32xf32>
    %23 = arith.truncf %22 : vector<8x32xf32> to vector<8x32xbf16>
    %c0_14 = arith.constant 0 : index
    %c0_15 = arith.constant 0 : index
    %24 = vector.load %arg6[%c0_14, %c0_15] : memref<8x32xbf16, #tpu.memory_space<vmem>>, vector<8x32xbf16>
    %cst_16 = arith.constant dense<0.000000e+00> : vector<8x8xf32>
    %25 = tpu.matmul %24, %23, %cst_16 {dimension_numbers = #tpu.dot_dimension_numbers<[1], [1], [0], [0], [0, 0, 1, 0], [], []>} : vector<8x32xbf16>, vector<8x32xbf16>, vector<8x8xf32> -> vector<8x8xf32>
    %26 = vector.extract_strided_slice %25 {offsets = [0, 0], sizes = [1, 8], strides = [1, 1]} : vector<8x8xf32> to vector<1x8xf32>
    %c0_17 = arith.constant 0 : index
    %c0_18 = arith.constant 0 : index
    %27 = vector.load %arg7[%c0_17, %c0_18] : memref<1x1xf32, #tpu.memory_space<vmem>>, vector<1x1xf32>
    %28 = vector.broadcast %27 : vector<1x1xf32> to vector<1x8xf32>
    %29 = arith.addf %26, %28 : vector<1x8xf32>
    %cst_19 = arith.constant 0.000000e+00 : f32
    %30 = vector.broadcast %cst_19 : f32 to vector<1x8xf32>
    %31 = arith.subf %30, %29 : vector<1x8xf32>
    %32 = math.exp %31 : vector<1x8xf32>
    %cst_20 = arith.constant 1.000000e+00 : f32
    %33 = vector.broadcast %cst_20 : f32 to vector<1x8xf32>
    %34 = arith.addf %33, %32 : vector<1x8xf32>
    %cst_21 = arith.constant 1.000000e+00 : f32
    %35 = vector.broadcast %cst_21 : f32 to vector<1x8xf32>
    %36 = arith.divf %35, %34 : vector<1x8xf32>
    %37 = vector.shape_cast %36 : vector<1x8xf32> to vector<1x1x8xf32>
    %c0_22 = arith.constant 0 : index
    %c0_23 = arith.constant 0 : index
    %c0_24 = arith.constant 0 : index
    %38 = vector.load %arg8[%c0_22, %c0_23, %c0_24] : memref<1x1x8xf32, #tpu.memory_space<vmem>>, vector<1x1x8xf32>
    tpu.vector_store %arg8[%c0_22, %c0_23, %c0_24], %37 {strides = array<i32>} : memref<1x1x8xf32, #tpu.memory_space<vmem>>, vector<1x1x8xf32>,
    return
  }
  func.func @transform_0(%arg0: i32) -> (i32, i32) {
    %c0_i32 = arith.constant 0 : i32
    %c0_i32_0 = arith.constant 0 : i32
    return %arg0, %c0_i32 : i32, i32
  }
  func.func @transform_1(%arg0: i32) -> (i32, i32) {
    %c0_i32 = arith.constant 0 : i32
    %c0_i32_0 = arith.constant 0 : i32
    %c0_i32_1 = arith.constant 0 : i32
    return %c0_i32, %c0_i32_0 : i32, i32
  }
  func.func @transform_2(%arg0: i32) -> (i32, i32) {
    %c0_i32 = arith.constant 0 : i32
    %c0_i32_0 = arith.constant 0 : i32
    %c0_i32_1 = arith.constant 0 : i32
    return %c0_i32, %c0_i32_0 : i32, i32
  }
  func.func @transform_3(%arg0: i32) -> (i32, i32) {
    %c0_i32 = arith.constant 0 : i32
    %c0_i32_0 = arith.constant 0 : i32
    %c0_i32_1 = arith.constant 0 : i32
    return %c0_i32, %c0_i32_0 : i32, i32
  }
  func.func @transform_4(%arg0: i32) -> (i32, i32) {
    %c0_i32 = arith.constant 0 : i32
    %c0_i32_0 = arith.constant 0 : i32
    %c0_i32_1 = arith.constant 0 : i32
    return %c0_i32, %c0_i32_0 : i32, i32
  }
  func.func @transform_5(%arg0: i32) -> (i32, i32) {
    %c0_i32 = arith.constant 0 : i32
    %c0_i32_0 = arith.constant 0 : i32
    %c0_i32_1 = arith.constant 0 : i32
    return %c0_i32, %c0_i32_0 : i32, i32
  }
  func.func @transform_6(%arg0: i32) -> (i32, i32) {
    %c0_i32 = arith.constant 0 : i32
    %c0_i32_0 = arith.constant 0 : i32
    %c0_i32_1 = arith.constant 0 : i32
    return %c0_i32, %c0_i32_0 : i32, i32
  }
  func.func @transform_7(%arg0: i32) -> (i32, i32, i32) {
    %c0_i32 = arith.constant 0 : i32
    %c0_i32_0 = arith.constant 0 : i32
    %c0_i32_1 = arith.constant 0 : i32
    return %arg0, %c0_i32, %c0_i32_0 : i32, i32, i32
  }
}

</mosaic_0001>

<llo_original>
// kernel: tpu_custom_call.1
$region0: #{tpu_custom_call.1}
  #allocation0 [shape = 'u32[]', space=smem, size = 0x4, offset = 0x4, fixed_abs, tag = 'smem constant byte address 0x4 - core index']
  #allocation1 [shape = 'u32[144,128]{1,0:T(1,128)}', space=vmem, size = 0x12000, scoped, tag = 'internal scratch']
  #allocation2 [shape = 'f32[1,1]{1,0:T(1,128)S(1)}', space=vmem, size = 0x200, scoped, tag = 'scoped memory for tpu_custom_call.1']
  %s0 = inlined_call_operand.vmem [shape: f32[8,64], index: 0, kind: input, shape index: {}]
  %s1 = inlined_call_operand.vmem [shape: bf16[64,32], index: 1, kind: input, shape index: {}]
  %s2 = inlined_call_operand.vmem [shape: f32[1,32], index: 2, kind: input, shape index: {}]
  %s3 = inlined_call_operand.vmem [shape: bf16[32,32], index: 3, kind: input, shape index: {}]
  %s4 = inlined_call_operand.vmem [shape: f32[1,32], index: 4, kind: input, shape index: {}]
  %s5 = inlined_call_operand.vmem [shape: bf16[8,32], index: 5, kind: input, shape index: {}]
  %s6 = inlined_call_operand.<no memory space> [shape: f32[1,1], index: 6, kind: input, shape index: {}]
  %s7 = inlined_call_operand.hbm [shape: f32[1,1,8], index: 7, kind: output, shape index: {}]
  %s8 = sld [smem:[#allocation0]]
  $region38: #{tpu_custom_call.1} parent=0
    _
  %s10 = ssub.s32 1, %s8
  %s11 = scalar_select 0, %s10, %s8
  %v12 = vstv %s6
  %13 = vst [vmem:[#allocation2] sm:$0x1] %v12
  $region1: #{tpu_custom_call.1} parent=0
    #allocation3 [shape = 'u8[512]{0}', space=vmem, size = 0x400, scoped, tag = 'output window, operand 0, single buffered']
    #allocation4 [shape = 's32[1]{0}', space=sflag, size = 0x4, scoped, tag = 'scoped memory for tpu_custom_call.1']
    %14 = vsyncpa [#allocation4], 0
    // Predicated region
    $region2: #{tpu_custom_call.1} parent=1 // pred_check
      _
    $region3: #{tpu_custom_call.1} parent=1 // pred_check_branch
      %16 = sbr.rel (0) target = $region5
    $region4: #{tpu_custom_call.1} parent=1 // pred_region
      _
    $region5: #{tpu_custom_call.1} parent=1 // pred_fallthru
      _
    // Predicated region
    $region6: #{tpu_custom_call.1} parent=1 // pred_check
      _
    $region7: #{tpu_custom_call.1} parent=1 // pred_check_branch
      %18 = sbr.rel (0) target = $region9
    $region8: #{tpu_custom_call.1} parent=1 // pred_region
      _
    $region9: #{tpu_custom_call.1} parent=1 // pred_fallthru
      _
    // Predicated region
    $region10: #{tpu_custom_call.1} parent=1 // pred_check
      _
    $region11: #{tpu_custom_call.1} parent=1 // pred_check_branch
      %20 = sbr.rel (0) target = $region13
    $region12: #{tpu_custom_call.1} parent=1 // pred_region
      _
    $region13: #{tpu_custom_call.1} parent=1 // pred_fallthru
      _
    // Predicated region
    $region14: #{tpu_custom_call.1} parent=1 // pred_check
      _
    $region15: #{tpu_custom_call.1} parent=1 // pred_check_branch
      %22 = sbr.rel (0) target = $region17
    $region16: #{tpu_custom_call.1} parent=1 // pred_region
      _
    $region17: #{tpu_custom_call.1} parent=1 // pred_fallthru
      _
    // Predicated region
    $region18: #{tpu_custom_call.1} parent=1 // pred_check
      _
    $region19: #{tpu_custom_call.1} parent=1 // pred_check_branch
      %24 = sbr.rel (0) target = $region21
    $region20: #{tpu_custom_call.1} parent=1 // pred_region
      _
    $region21: #{tpu_custom_call.1} parent=1 // pred_fallthru
      _
    // Predicated region
    $region22: #{tpu_custom_call.1} parent=1 // pred_check
      _
    $region23: #{tpu_custom_call.1} parent=1 // pred_check_branch
      %26 = sbr.rel (0) target = $region25
    $region24: #{tpu_custom_call.1} parent=1 // pred_region
      _
    $region25: #{tpu_custom_call.1} parent=1 // pred_fallthru
      _
    // Predicated region
    $region26: #{tpu_custom_call.1} parent=1 // pred_check
      _
    $region27: #{tpu_custom_call.1} parent=1 // pred_check_branch
      %28 = sbr.rel (0) target = $region29
    $region28: #{tpu_custom_call.1} parent=1 // pred_region
      _
    $region29: #{tpu_custom_call.1} parent=1 // pred_fallthru
      _
    %v30 = vld [vmem:[%s0] sm:$0xff]
    %v31 = vpack.c.bf16 %v30, %v30
    %v32 = vld [vmem:[%s1] sm:$0xf]
    %v33 = vld [vmem:[%s1 + $0x4] sm:$0xf]
    %v34 = vld [vmem:[%s1 + $0x8] sm:$0xf]
    %v35 = vld [vmem:[%s1 + $0xc] sm:$0xf]
    %v36 = vld [vmem:[%s1 + $0x10] sm:$0xf]
    %v37 = vld [vmem:[%s1 + $0x14] sm:$0xf]
    %v38 = vld [vmem:[%s1 + $0x18] sm:$0xf]
    %v39 = vld [vmem:[%s1 + $0x1c] sm:$0xf]
    %v40 = vld [vmem:[%s2] sm:$0x1]
    %v42 = vlaneseq
    %v43 = vshrl.u32 %v42, 7
    %v44 = vsub.s32 0, %v43
    %v45 = vrot.slane %v40, %v44
    %v55 = vunpack.c.l.b16 %v32
    %v56 = vunpack.c.l.b16 %v33
    %v57 = vunpack.c.l.b16 %v34
    %v58 = vunpack.c.l.b16 %v35
    %v59 = vunpack.c.l.b16 %v36
    %v60 = vunpack.c.l.b16 %v37
    %v61 = vunpack.c.l.b16 %v38
    %v62 = vunpack.c.l.b16 %v39
    %v63 = vpack.c.b16 %v56, %v55
    %v64 = vpack.c.b16 %v58, %v57
    %v65 = vpack.c.b16 %v60, %v59
    %v66 = vpack.c.b16 %v62, %v61
    %vm71 = vcmask 523264
    %v73 = vsel %vm71, %v31, 0
    %75 = vmatprep.subr.bf16.mxu0 0
    %76 = vmatpush1.bf16.msra.mxu0 0
    %77 = vmatprep.subr.bf16.mxu0 0
    %78 = vmatpush1.bf16.msra.mxu0 0
    %79 = vmatprep.subr.bf16.mxu0 0
    %80 = vmatpush1.bf16.msra.mxu0 0
    %81 = vmatprep.subr.bf16.mxu0 0
    %82 = vmatpush1.bf16.msra.mxu0 0
    %83 = vmatprep.subr.bf16.mxu0 0
    %84 = vmatpush1.bf16.msra.mxu0 %v66
    %85 = vmatprep.subr.bf16.mxu0 0
    %86 = vmatpush1.bf16.msra.mxu0 %v65
    %87 = vmatprep.subr.bf16.mxu0 0
    %88 = vmatpush1.bf16.msra.mxu0 %v64
    %89 = vmatprep.subr.bf16.mxu0 0
    %90 = vmatpush1.bf16.msra.mxu0 %v63
    %91 = vmatprep.subr.bf16.mxu0 0
    %92 = vmatpush2.bf16.msra.mxu0 0
    %93 = vmatprep.subr.bf16.mxu0 0
    %94 = vmatpush2.bf16.msra.mxu0 0
    %95 = vmatprep.subr.bf16.mxu0 0
    %96 = vmatpush2.bf16.msra.mxu0 0
    %97 = vmatprep.subr.bf16.mxu0 0
    %98 = vmatpush2.bf16.msra.mxu0 0
    %99 = vmatprep.subr.bf16.mxu0 0
    %100 = vmatpush2.bf16.msra.mxu0 0
    %101 = vmatprep.subr.bf16.mxu0 0
    %102 = vmatpush2.bf16.msra.mxu0 0
    %103 = vmatprep.subr.bf16.mxu0 0
    %104 = vmatpush2.bf16.msra.mxu0 0
    %105 = vmatprep.subr.bf16.mxu0 0
    %106 = vmatpush2.bf16.msra.mxu0 0
    %107 = vmatprep.mubr.bf16.mxu0 0
    %108 = vmatmul.mubr.bf16.gmra.mxu0 %v73
    %v109 = vpop.f32.mrf.mxu0
    %v110 = vadd.f32 %v45, %v109
    %v111 = vpop.f32.mrf.mxu0
    %v112 = vpop.f32.mrf.mxu0
    %v113 = vpop.f32.mrf.mxu0
    %114 = vdwg.mxu0
    %vm115 = vcmp.gt.f32.partialorder %v110, 0.0
    %v116 = vmul.f32 %v110, 0.01
    %v117 = vsel %vm115, %v110, %v116
    %v118 = vpack.c.bf16 %v117, %v117
    %v119 = vld [vmem:[%s3] sm:$0xf]
    %v120 = vld [vmem:[%s3 + $0x4] sm:$0xf]
    %v121 = vld [vmem:[%s3 + $0x8] sm:$0xf]
    %v122 = vld [vmem:[%s3 + $0xc] sm:$0xf]
    %v123 = vld [vmem:[%s4] sm:$0x1]
    %v125 = vlaneseq
    %v126 = vshrl.u32 %v125, 7
    %v127 = vsub.s32 0, %v126
    %v128 = vrot.slane %v123, %v127
    %v134 = vunpack.c.l.b16 %v119
    %v135 = vunpack.c.l.b16 %v120
    %v136 = vunpack.c.l.b16 %v121
    %v137 = vunpack.c.l.b16 %v122
    %v138 = vpack.c.b16 %v135, %v134
    %v139 = vpack.c.b16 %v137, %v136
    %vm142 = vcmask 261120
    %v144 = vsel %vm142, %v118, 0
    %146 = vmatprep.subr.bf16.mxu0 0
    %147 = vmatpush1.bf16.msra.mxu0 0
    %148 = vmatprep.subr.bf16.mxu0 0
    %149 = vmatpush1.bf16.msra.mxu0 0
    %150 = vmatprep.subr.bf16.mxu0 0
    %151 = vmatpush1.bf16.msra.mxu0 0
    %152 = vmatprep.subr.bf16.mxu0 0
    %153 = vmatpush1.bf16.msra.mxu0 0
    %154 = vmatprep.subr.bf16.mxu0 0
    %155 = vmatpush1.bf16.msra.mxu0 0
    %156 = vmatprep.subr.bf16.mxu0 0
    %157 = vmatpush1.bf16.msra.mxu0 0
    %158 = vmatprep.subr.bf16.mxu0 0
    %159 = vmatpush1.bf16.msra.mxu0 %v139
    %160 = vmatprep.subr.bf16.mxu0 0
    %161 = vmatpush1.bf16.msra.mxu0 %v138
    %162 = vmatprep.subr.bf16.mxu0 0
    %163 = vmatpush2.bf16.msra.mxu0 0
    %164 = vmatprep.subr.bf16.mxu0 0
    %165 = vmatpush2.bf16.msra.mxu0 0
    %166 = vmatprep.subr.bf16.mxu0 0
    %167 = vmatpush2.bf16.msra.mxu0 0
    %168 = vmatprep.subr.bf16.mxu0 0
    %169 = vmatpush2.bf16.msra.mxu0 0
    %170 = vmatprep.subr.bf16.mxu0 0
    %171 = vmatpush2.bf16.msra.mxu0 0
    %172 = vmatprep.subr.bf16.mxu0 0
    %173 = vmatpush2.bf16.msra.mxu0 0
    %174 = vmatprep.subr.bf16.mxu0 0
    %175 = vmatpush2.bf16.msra.mxu0 0
    %176 = vmatprep.subr.bf16.mxu0 0
    %177 = vmatpush2.bf16.msra.mxu0 0
    %178 = vmatprep.mubr.bf16.mxu0 0
    %179 = vmatmul.mubr.bf16.gmra.mxu0 %v144
    %v180 = vpop.f32.mrf.mxu0
    %v181 = vadd.f32 %v128, %v180
    %v182 = vpop.f32.mrf.mxu0
    %v183 = vpop.f32.mrf.mxu0
    %v184 = vpop.f32.mrf.mxu0
    %185 = vdwg.mxu0
    %vm186 = vcmp.gt.f32.partialorder %v181, 0.0
    %v187 = vmul.f32 %v181, 0.01
    %v188 = vsel %vm186, %v181, %v187
    %v189 = vpack.c.bf16 %v188, %v188
    %v190 = vld [vmem:[%s5] sm:$0xf]
    %v192 = vsel %vm142, %v190, 0
    %v195 = vsel %vm142, %v189, 0
    %197 = vmatprep.subr.bf16.mxu0 0
    %198 = vmatpush1.bf16.xpose.msra.mxu0 0
    %199 = vmatprep.subr.bf16.mxu0 0
    %200 = vmatpush1.bf16.xpose.msra.mxu0 0
    %201 = vmatprep.subr.bf16.mxu0 0
    %202 = vmatpush1.bf16.xpose.msra.mxu0 0
    %203 = vmatprep.subr.bf16.mxu0 0
    %204 = vmatpush1.bf16.xpose.msra.mxu0 0
    %205 = vmatprep.subr.bf16.mxu0 0
    %206 = vmatpush1.bf16.xpose.msra.mxu0 0
    %207 = vmatprep.subr.bf16.mxu0 0
    %208 = vmatpush1.bf16.xpose.msra.mxu0 0
    %209 = vmatprep.subr.bf16.mxu0 0
    %210 = vmatpush1.bf16.xpose.msra.mxu0 0
    %211 = vmatprep.subr.bf16.mxu0 0
    %212 = vmatpush1.bf16.xpose.msra.mxu0 %v195
    %213 = vmatprep.subr.bf16.mxu0 0
    %214 = vmatpush2.bf16.xpose.msra.mxu0 0
    %215 = vmatprep.subr.bf16.mxu0 0
    %216 = vmatpush2.bf16.xpose.msra.mxu0 0
    %217 = vmatprep.subr.bf16.mxu0 0
    %218 = vmatpush2.bf16.xpose.msra.mxu0 0
    %219 = vmatprep.subr.bf16.mxu0 0
    %220 = vmatpush2.bf16.xpose.msra.mxu0 0
    %221 = vmatprep.subr.bf16.mxu0 0
    %222 = vmatpush2.bf16.xpose.msra.mxu0 0
    %223 = vmatprep.subr.bf16.mxu0 0
    %224 = vmatpush2.bf16.xpose.msra.mxu0 0
    %225 = vmatprep.subr.bf16.mxu0 0
    %226 = vmatpush2.bf16.xpose.msra.mxu0 0
    %227 = vmatprep.subr.bf16.mxu0 0
    %228 = vmatpush2.bf16.xpose.msra.mxu0 0
    %229 = vmatprep.mubr.bf16.mxu0 0
    %230 = vmatmul.mubr.bf16.gmra.mxu0 %v192
    %v231 = vpop.f32.mrf.mxu0
    %v232 = vadd.f32 0.0, %v231
    %v233 = vpop.f32.mrf.mxu0
    %v234 = vpop.f32.mrf.mxu0
    %v235 = vpop.f32.mrf.mxu0
    %236 = vdwg.mxu0
    %v237 = vld [vmem:[#allocation2] sm:$0x1]
    %239 = vset.pattern.permute.xlu0 0
    %240 = vperm.xlu0 %239, %v237
    %v241 = vpop.permute.xlu0 %240
    %v243 = vlaneseq
    %v244 = vshrl.u32 %v243, 7
    %v245 = vsub.s32 0, %v244
    %v246 = vrot.slane %v241, %v245
    %v247 = vadd.f32 %v232, %v246
    %v248 = vsub.f32 0.0, %v247
    %v249 = vmul.f32 %v248, 1.442695
    %v250 = vpow.pop %v249
    %v251 = vadd.f32 %v250, 1.0
    %v252 = vrcp.pop %v251
    %v253 = vmul.f32 1.0, %v252
    %vm254 = vcmask 57344
    %255 = vst.msk [vmem:[#allocation3] sm:$0x1] %vm254, %v253
    // Predicated region
    $region30: #{tpu_custom_call.1} parent=1 // pred_check
      _
    $region31: #{tpu_custom_call.1} parent=1 // pred_check_branch
      %257 = sbr.rel (0) target = $region33
    $region32: #{tpu_custom_call.1} parent=1 // pred_region
      %s259 = ssub.s32 16, 16
      %260 = vsyncadd [#allocation4], %s259
      %s262 = sshll.u32 [#allocation3], 4
      %s263 = int_to_ptr.vmem [resolvable:$true] %s262
      %265 = dma.vmem_to_hbm [thread:$0]  %s263, 16, %s7, [#allocation4]
    $region33: #{tpu_custom_call.1} parent=1 // pred_fallthru
      _
    // Predicated region
    $region34: #{tpu_custom_call.1} parent=1 // pred_check
      _
    $region35: #{tpu_custom_call.1} parent=1 // pred_check_branch
      %267 = sbr.rel (0) target = $region37
    $region36: #{tpu_custom_call.1} parent=1 // pred_region
      %268 = dma.done [#allocation4], 16
    $region37: #{tpu_custom_call.1} parent=1 // pred_fallthru
      _
    %269 = vsyncpa [#allocation4], 1

</llo_original>
